<compile_context>
chip_gen: v6e
topology: v6e:2x2x1
jax: 0.10.0
libtpu: 0.0.40
codegen_flags: <defaults>
</compile_context>

<pallas_src>
import jax
import jax.numpy as jnp
from jax.experimental import pallas as pl
from jax.experimental.pallas import tpu as pltpu


NEG_SLOPE = 0.01  # F.leaky_relu default negative_slope


def _leaky_relu(x):
    return jnp.where(x > 0, x, NEG_SLOPE * x)


def pack_params(params):
    """params: list of (W[(out,in)], b[(out,)]) -- PyTorch nn.Linear convention.

    Returns (flat f32[P] buffer, layer_dims tuple of (fan_in, fan_out)).
    Per-layer packing: W row-major (o * fan_in + k), then bias (o).
    """
    flat, dims = [], []
    for (w, b) in params:
        fan_out, fan_in = w.shape
        dims.append((int(fan_in), int(fan_out)))
        flat.append(w.reshape(-1).astype(jnp.float32))
        flat.append(b.reshape(-1).astype(jnp.float32))
    return jnp.concatenate(flat), tuple(dims)


def make_fair_learner_kernel(layer_dims):
    """Kernel unrolled for the static, tiny layer sizes.

    Every activation is a dense (8, TL) slab (batch packed on sublanes+lanes),
    so each scalar-broadcast FMA / leaky_relu runs at full vreg occupancy.
    """
    n_layers = len(layer_dims)

    def kernel(p_ref, x_ref, o_ref):
        # p_ref: f32[P] packed weights+biases, resident in SMEM (scalar reads)
        # x_ref: (C_in, 8, TL) input block;  o_ref: (8, TL) output block
        h = None
        off = 0
        for li, (fi, fo) in enumerate(layer_dims):
            get = (lambda k: x_ref[k]) if li == 0 else (lambda k, hh=h: hh[k])
            new_h = []
            for o in range(fo):
                # y_o = sum_k W[o,k] * h_k + b_o  (dense (8,TL) VPU FMAs)
                acc = get(0) * p_ref[off + o * fi]
                for k in range(1, fi):
                    acc = acc + get(k) * p_ref[off + o * fi + k]
                acc = acc + p_ref[off + fi * fo + o]          # bias
                if li < n_layers - 1:                         # no act on last layer
                    acc = _leaky_relu(acc)
                new_h.append(acc)
            h = new_h
            off += fi * fo + fo

        # final layer has fan_out == 1 -> one dense (8, TL) slab
        o_ref[...] = h[0].astype(o_ref.dtype)

    return kernel


def _pick_lane_tile(lanes, max_lane_tile):
    """Single step if it fits, else the largest /128 divisor of `lanes`."""
    if lanes <= max_lane_tile:
        return lanes
    t = (max_lane_tile // 128) * 128
    while t >= 128:
        if lanes % t == 0:
            return t
        t -= 128
    return lanes   # fallback: one (large) step


def fair_learner_forward_fm(x_fm, params, *, max_lane_tile=8192):
    """Kernel path.  x_fm: (C_in, N) feature-major float32.  Returns (N, 1).

    max_lane_tile=8192 lanes == 65536 samples / ~2 MiB of x per grid step
    (double-buffered: well under the scoped-VMEM default on v5e/v6e/v7x).
    """
    x_fm = x_fm.astype(jnp.float32)
    C_in, N = x_fm.shape
    p_flat, layer_dims = pack_params(params)
    assert layer_dims[0][0] == C_in, (layer_dims, C_in)
    assert layer_dims[-1][1] == 1, layer_dims

    # pad the batch to a multiple of 8 so it packs densely onto sublanes
    n_pad = (-N) % 8
    if n_pad:
        x_fm = jnp.pad(x_fm, ((0, 0), (0, n_pad)))
    n_total = N + n_pad
    lanes = n_total // 8

    tile_l = _pick_lane_tile(lanes, max_lane_tile)
    grid = (lanes // tile_l,)

    # Free reshape (row-major relabel of the batch axis): sample n = s*lanes + l
    # lands at (sublane s, lane l).  No HBM transpose pass.
    x3 = x_fm.reshape(C_in, 8, lanes)

    kernel = make_fair_learner_kernel(layer_dims)

    # Advisory cost hint: cheap mem-bound op.
    flops = 2 * n_total * sum(fi * fo for fi, fo in layer_dims)
    bytes_accessed = x3.size * 4 + n_total * 4 + int(p_flat.size) * 4
    cost = pl.CostEstimate(flops=flops, transcendentals=0,
                           bytes_accessed=bytes_accessed)

    out = pl.pallas_call(
        kernel,
        out_shape=jax.ShapeDtypeStruct((8, lanes), jnp.float32),
        grid_spec=pltpu.PrefetchScalarGridSpec(
            num_scalar_prefetch=0,
            grid=grid,
            in_specs=[
                # one packed parameter buffer, whole thing resident in SMEM
                pl.BlockSpec(memory_space=pltpu.MemorySpace.SMEM),
                # x block: (C_in, 8, tile_l) -- batch dense on (sublane, lane)
                pl.BlockSpec((C_in, 8, tile_l), lambda i: (0, 0, i)),
            ],
            out_specs=pl.BlockSpec((8, tile_l), lambda i: (0, i)),
        ),
        compiler_params=pltpu.CompilerParams(
            dimension_semantics=("parallel",)),
        cost_estimate=cost,
    )(p_flat, x3)

    # (8, lanes) flattens row-major back to batch order; drop padding.
    return out.reshape(n_total)[:N].reshape(N, 1)


def fair_learner_forward(x, params, **kw):
    """PyTorch-layout entry: x (N, C_in) -> (N, 1).

    Does ONE explicit transpose to feature-major (an extra HBM pass); prefer
    fair_learner_forward_fm with feature-major activations upstream.
    """
    return fair_learner_forward_fm(x.T, params, **kw)


def init_fair_learner_params(key, input_channels, hidden_channels=2, hidden_layers=2):
    """Deterministic synthetic init (PyTorch-Linear-like uniform bounds).

    Returns list of (W[(out,in)], b[(out,)]) for:
      [in->H] + hidden_layers * [H->H] + [H->1]
    """
    dims = [(input_channels, hidden_channels)]
    dims += [(hidden_channels, hidden_channels)] * hidden_layers
    dims += [(hidden_channels, 1)]

    params = []
    for (fan_in, fan_out) in dims:
        key, kw, kb = jax.random.split(key, 3)
        bound = 1.0 / (fan_in ** 0.5)
        w = jax.random.uniform(kw, (fan_out, fan_in), jnp.float32, -bound, bound)
        b = jax.random.uniform(kb, (fan_out,), jnp.float32, -bound, bound)
        params.append((w, b))
    return params


def fair_learner_ref(x, params):
    """Pure-JAX reference for correctness checking."""
    h = x
    for (w, b) in params[:-1]:
        h = h @ w.T + b
        h = _leaky_relu(h)
    w, b = params[-1]
    return h @ w.T + b


if __name__ == "__main__":
    key = jax.random.PRNGKey(0)
    k_x, k_p = jax.random.split(key)

    N = 1024            # small demo batch: lanes = 128, a single grid step
    input_channels = 8  # features per row
    x = jax.random.normal(k_x, (N, input_channels), jnp.float32)

    params = init_fair_learner_params(k_p, input_channels,
                                      hidden_channels=2, hidden_layers=2)

    out = fair_learner_forward(x, params)
    out = jax.block_until_ready(out)

    ref = fair_learner_ref(x, params)
    assert out.shape == (N, 1), out.shape
    err = jnp.max(jnp.abs(out - ref))
    assert jnp.allclose(out, ref, atol=1e-5, rtol=1e-5), f"max err {err}"

    print("KERNEL_OK")
</pallas_src>

<mosaic_0001>
module attributes {stable_mosaic.version = 11 : i64} {
  func.func @kernel(%arg0: i32, %arg1: memref<33xf32, #tpu.memory_space<smem>>, %arg2: memref<8x8x128xf32, #tpu.memory_space<vmem>>, %arg3: memref<8x128xf32, #tpu.memory_space<vmem>>) attributes {dimension_semantics = [#tpu.dimension_semantics<parallel>], iteration_bounds = array<i64: 1>, scalar_prefetch = 0 : i64, scratch_operands = 0 : i64, tpu.core_type = #tpu.core_type<tc>, window_params = [{transform_indices = @transform_0, window_bounds = array<i64: 33>}, {transform_indices = @transform_1, window_bounds = array<i64: 8, 8, 128>}, {transform_indices = @transform_2, window_bounds = array<i64: 8, 128>}]} {
    %c0 = arith.constant 0 : index
    %c0_0 = arith.constant 0 : index
    %c0_1 = arith.constant 0 : index
    %0 = vector.load %arg2[%c0, %c0_0, %c0_1] : memref<8x8x128xf32, #tpu.memory_space<vmem>>, vector<1x8x128xf32>
    %1 = vector.shape_cast %0 : vector<1x8x128xf32> to vector<8x128xf32>
    %c0_2 = arith.constant 0 : index
    %2 = memref.load %arg1[%c0_2] : memref<33xf32, #tpu.memory_space<smem>>
    %3 = vector.broadcast %2 : f32 to vector<8x128xf32>
    %4 = arith.mulf %1, %3 : vector<8x128xf32>
    %c1 = arith.constant 1 : index
    %c0_3 = arith.constant 0 : index
    %c0_4 = arith.constant 0 : index
    %5 = vector.load %arg2[%c1, %c0_3, %c0_4] : memref<8x8x128xf32, #tpu.memory_space<vmem>>, vector<1x8x128xf32>
    %6 = vector.shape_cast %5 : vector<1x8x128xf32> to vector<8x128xf32>
    %c1_5 = arith.constant 1 : index
    %7 = memref.load %arg1[%c1_5] : memref<33xf32, #tpu.memory_space<smem>>
    %8 = vector.broadcast %7 : f32 to vector<8x128xf32>
    %9 = arith.mulf %6, %8 : vector<8x128xf32>
    %10 = arith.addf %4, %9 : vector<8x128xf32>
    %c2 = arith.constant 2 : index
    %c0_6 = arith.constant 0 : index
    %c0_7 = arith.constant 0 : index
    %11 = vector.load %arg2[%c2, %c0_6, %c0_7] : memref<8x8x128xf32, #tpu.memory_space<vmem>>, vector<1x8x128xf32>
    %12 = vector.shape_cast %11 : vector<1x8x128xf32> to vector<8x128xf32>
    %c2_8 = arith.constant 2 : index
    %13 = memref.load %arg1[%c2_8] : memref<33xf32, #tpu.memory_space<smem>>
    %14 = vector.broadcast %13 : f32 to vector<8x128xf32>
    %15 = arith.mulf %12, %14 : vector<8x128xf32>
    %16 = arith.addf %10, %15 : vector<8x128xf32>
    %c3 = arith.constant 3 : index
    %c0_9 = arith.constant 0 : index
    %c0_10 = arith.constant 0 : index
    %17 = vector.load %arg2[%c3, %c0_9, %c0_10] : memref<8x8x128xf32, #tpu.memory_space<vmem>>, vector<1x8x128xf32>
    %18 = vector.shape_cast %17 : vector<1x8x128xf32> to vector<8x128xf32>
    %c3_11 = arith.constant 3 : index
    %19 = memref.load %arg1[%c3_11] : memref<33xf32, #tpu.memory_space<smem>>
    %20 = vector.broadcast %19 : f32 to vector<8x128xf32>
    %21 = arith.mulf %18, %20 : vector<8x128xf32>
    %22 = arith.addf %16, %21 : vector<8x128xf32>
    %c4 = arith.constant 4 : index
    %c0_12 = arith.constant 0 : index
    %c0_13 = arith.constant 0 : index
    %23 = vector.load %arg2[%c4, %c0_12, %c0_13] : memref<8x8x128xf32, #tpu.memory_space<vmem>>, vector<1x8x128xf32>
    %24 = vector.shape_cast %23 : vector<1x8x128xf32> to vector<8x128xf32>
    %c4_14 = arith.constant 4 : index
    %25 = memref.load %arg1[%c4_14] : memref<33xf32, #tpu.memory_space<smem>>
    %26 = vector.broadcast %25 : f32 to vector<8x128xf32>
    %27 = arith.mulf %24, %26 : vector<8x128xf32>
    %28 = arith.addf %22, %27 : vector<8x128xf32>
    %c5 = arith.constant 5 : index
    %c0_15 = arith.constant 0 : index
    %c0_16 = arith.constant 0 : index
    %29 = vector.load %arg2[%c5, %c0_15, %c0_16] : memref<8x8x128xf32, #tpu.memory_space<vmem>>, vector<1x8x128xf32>
    %30 = vector.shape_cast %29 : vector<1x8x128xf32> to vector<8x128xf32>
    %c5_17 = arith.constant 5 : index
    %31 = memref.load %arg1[%c5_17] : memref<33xf32, #tpu.memory_space<smem>>
    %32 = vector.broadcast %31 : f32 to vector<8x128xf32>
    %33 = arith.mulf %30, %32 : vector<8x128xf32>
    %34 = arith.addf %28, %33 : vector<8x128xf32>
    %c6 = arith.constant 6 : index
    %c0_18 = arith.constant 0 : index
    %c0_19 = arith.constant 0 : index
    %35 = vector.load %arg2[%c6, %c0_18, %c0_19] : memref<8x8x128xf32, #tpu.memory_space<vmem>>, vector<1x8x128xf32>
    %36 = vector.shape_cast %35 : vector<1x8x128xf32> to vector<8x128xf32>
    %c6_20 = arith.constant 6 : index
    %37 = memref.load %arg1[%c6_20] : memref<33xf32, #tpu.memory_space<smem>>
    %38 = vector.broadcast %37 : f32 to vector<8x128xf32>
    %39 = arith.mulf %36, %38 : vector<8x128xf32>
    %40 = arith.addf %34, %39 : vector<8x128xf32>
    %c7 = arith.constant 7 : index
    %c0_21 = arith.constant 0 : index
    %c0_22 = arith.constant 0 : index
    %41 = vector.load %arg2[%c7, %c0_21, %c0_22] : memref<8x8x128xf32, #tpu.memory_space<vmem>>, vector<1x8x128xf32>
    %42 = vector.shape_cast %41 : vector<1x8x128xf32> to vector<8x128xf32>
    %c7_23 = arith.constant 7 : index
    %43 = memref.load %arg1[%c7_23] : memref<33xf32, #tpu.memory_space<smem>>
    %44 = vector.broadcast %43 : f32 to vector<8x128xf32>
    %45 = arith.mulf %42, %44 : vector<8x128xf32>
    %46 = arith.addf %40, %45 : vector<8x128xf32>
    %c16 = arith.constant 16 : index
    %47 = memref.load %arg1[%c16] : memref<33xf32, #tpu.memory_space<smem>>
    %48 = vector.broadcast %47 : f32 to vector<8x128xf32>
    %49 = arith.addf %46, %48 : vector<8x128xf32>
    %cst = arith.constant 0.000000e+00 : f32
    %50 = vector.broadcast %cst : f32 to vector<8x128xf32>
    %51 = arith.cmpf ogt, %49, %50 : vector<8x128xf32>
    %cst_24 = arith.constant 0.00999999977 : f32
    %52 = vector.broadcast %cst_24 : f32 to vector<8x128xf32>
    %53 = arith.mulf %52, %49 : vector<8x128xf32>
    %54 = arith.select %51, %49, %53 : vector<8x128xi1>, vector<8x128xf32>
    %c0_25 = arith.constant 0 : index
    %c0_26 = arith.constant 0 : index
    %c0_27 = arith.constant 0 : index
    %55 = vector.load %arg2[%c0_25, %c0_26, %c0_27] : memref<8x8x128xf32, #tpu.memory_space<vmem>>, vector<1x8x128xf32>
    %56 = vector.shape_cast %55 : vector<1x8x128xf32> to vector<8x128xf32>
    %c8 = arith.constant 8 : index
    %57 = memref.load %arg1[%c8] : memref<33xf32, #tpu.memory_space<smem>>
    %58 = vector.broadcast %57 : f32 to vector<8x128xf32>
    %59 = arith.mulf %56, %58 : vector<8x128xf32>
    %c1_28 = arith.constant 1 : index
    %c0_29 = arith.constant 0 : index
    %c0_30 = arith.constant 0 : index
    %60 = vector.load %arg2[%c1_28, %c0_29, %c0_30] : memref<8x8x128xf32, #tpu.memory_space<vmem>>, vector<1x8x128xf32>
    %61 = vector.shape_cast %60 : vector<1x8x128xf32> to vector<8x128xf32>
    %c9 = arith.constant 9 : index
    %62 = memref.load %arg1[%c9] : memref<33xf32, #tpu.memory_space<smem>>
    %63 = vector.broadcast %62 : f32 to vector<8x128xf32>
    %64 = arith.mulf %61, %63 : vector<8x128xf32>
    %65 = arith.addf %59, %64 : vector<8x128xf32>
    %c2_31 = arith.constant 2 : index
    %c0_32 = arith.constant 0 : index
    %c0_33 = arith.constant 0 : index
    %66 = vector.load %arg2[%c2_31, %c0_32, %c0_33] : memref<8x8x128xf32, #tpu.memory_space<vmem>>, vector<1x8x128xf32>
    %67 = vector.shape_cast %66 : vector<1x8x128xf32> to vector<8x128xf32>
    %c10 = arith.constant 10 : index
    %68 = memref.load %arg1[%c10] : memref<33xf32, #tpu.memory_space<smem>>
    %69 = vector.broadcast %68 : f32 to vector<8x128xf32>
    %70 = arith.mulf %67, %69 : vector<8x128xf32>
    %71 = arith.addf %65, %70 : vector<8x128xf32>
    %c3_34 = arith.constant 3 : index
    %c0_35 = arith.constant 0 : index
    %c0_36 = arith.constant 0 : index
    %72 = vector.load %arg2[%c3_34, %c0_35, %c0_36] : memref<8x8x128xf32, #tpu.memory_space<vmem>>, vector<1x8x128xf32>
    %73 = vector.shape_cast %72 : vector<1x8x128xf32> to vector<8x128xf32>
    %c11 = arith.constant 11 : index
    %74 = memref.load %arg1[%c11] : memref<33xf32, #tpu.memory_space<smem>>
    %75 = vector.broadcast %74 : f32 to vector<8x128xf32>
    %76 = arith.mulf %73, %75 : vector<8x128xf32>
    %77 = arith.addf %71, %76 : vector<8x128xf32>
    %c4_37 = arith.constant 4 : index
    %c0_38 = arith.constant 0 : index
    %c0_39 = arith.constant 0 : index
    %78 = vector.load %arg2[%c4_37, %c0_38, %c0_39] : memref<8x8x128xf32, #tpu.memory_space<vmem>>, vector<1x8x128xf32>
    %79 = vector.shape_cast %78 : vector<1x8x128xf32> to vector<8x128xf32>
    %c12 = arith.constant 12 : index
    %80 = memref.load %arg1[%c12] : memref<33xf32, #tpu.memory_space<smem>>
    %81 = vector.broadcast %80 : f32 to vector<8x128xf32>
    %82 = arith.mulf %79, %81 : vector<8x128xf32>
    %83 = arith.addf %77, %82 : vector<8x128xf32>
    %c5_40 = arith.constant 5 : index
    %c0_41 = arith.constant 0 : index
    %c0_42 = arith.constant 0 : index
    %84 = vector.load %arg2[%c5_40, %c0_41, %c0_42] : memref<8x8x128xf32, #tpu.memory_space<vmem>>, vector<1x8x128xf32>
    %85 = vector.shape_cast %84 : vector<1x8x128xf32> to vector<8x128xf32>
    %c13 = arith.constant 13 : index
    %86 = memref.load %arg1[%c13] : memref<33xf32, #tpu.memory_space<smem>>
    %87 = vector.broadcast %86 : f32 to vector<8x128xf32>
    %88 = arith.mulf %85, %87 : vector<8x128xf32>
    %89 = arith.addf %83, %88 : vector<8x128xf32>
    %c6_43 = arith.constant 6 : index
    %c0_44 = arith.constant 0 : index
    %c0_45 = arith.constant 0 : index
    %90 = vector.load %arg2[%c6_43, %c0_44, %c0_45] : memref<8x8x128xf32, #tpu.memory_space<vmem>>, vector<1x8x128xf32>
    %91 = vector.shape_cast %90 : vector<1x8x128xf32> to vector<8x128xf32>
    %c14 = arith.constant 14 : index
    %92 = memref.load %arg1[%c14] : memref<33xf32, #tpu.memory_space<smem>>
    %93 = vector.broadcast %92 : f32 to vector<8x128xf32>
    %94 = arith.mulf %91, %93 : vector<8x128xf32>
    %95 = arith.addf %89, %94 : vector<8x128xf32>
    %c7_46 = arith.constant 7 : index
    %c0_47 = arith.constant 0 : index
    %c0_48 = arith.constant 0 : index
    %96 = vector.load %arg2[%c7_46, %c0_47, %c0_48] : memref<8x8x128xf32, #tpu.memory_space<vmem>>, vector<1x8x128xf32>
    %97 = vector.shape_cast %96 : vector<1x8x128xf32> to vector<8x128xf32>
    %c15 = arith.constant 15 : index
    %98 = memref.load %arg1[%c15] : memref<33xf32, #tpu.memory_space<smem>>
    %99 = vector.broadcast %98 : f32 to vector<8x128xf32>
    %100 = arith.mulf %97, %99 : vector<8x128xf32>
    %101 = arith.addf %95, %100 : vector<8x128xf32>
    %c17 = arith.constant 17 : index
    %102 = memref.load %arg1[%c17] : memref<33xf32, #tpu.memory_space<smem>>
    %103 = vector.broadcast %102 : f32 to vector<8x128xf32>
    %104 = arith.addf %101, %103 : vector<8x128xf32>
    %cst_49 = arith.constant 0.000000e+00 : f32
    %105 = vector.broadcast %cst_49 : f32 to vector<8x128xf32>
    %106 = arith.cmpf ogt, %104, %105 : vector<8x128xf32>
    %cst_50 = arith.constant 0.00999999977 : f32
    %107 = vector.broadcast %cst_50 : f32 to vector<8x128xf32>
    %108 = arith.mulf %107, %104 : vector<8x128xf32>
    %109 = arith.select %106, %104, %108 : vector<8x128xi1>, vector<8x128xf32>
    %c18 = arith.constant 18 : index
    %110 = memref.load %arg1[%c18] : memref<33xf32, #tpu.memory_space<smem>>
    %111 = vector.broadcast %110 : f32 to vector<8x128xf32>
    %112 = arith.mulf %54, %111 : vector<8x128xf32>
    %c19 = arith.constant 19 : index
    %113 = memref.load %arg1[%c19] : memref<33xf32, #tpu.memory_space<smem>>
    %114 = vector.broadcast %113 : f32 to vector<8x128xf32>
    %115 = arith.mulf %109, %114 : vector<8x128xf32>
    %116 = arith.addf %112, %115 : vector<8x128xf32>
    %c22 = arith.constant 22 : index
    %117 = memref.load %arg1[%c22] : memref<33xf32, #tpu.memory_space<smem>>
    %118 = vector.broadcast %117 : f32 to vector<8x128xf32>
    %119 = arith.addf %116, %118 : vector<8x128xf32>
    %cst_51 = arith.constant 0.000000e+00 : f32
    %120 = vector.broadcast %cst_51 : f32 to vector<8x128xf32>
    %121 = arith.cmpf ogt, %119, %120 : vector<8x128xf32>
    %cst_52 = arith.constant 0.00999999977 : f32
    %122 = vector.broadcast %cst_52 : f32 to vector<8x128xf32>
    %123 = arith.mulf %122, %119 : vector<8x128xf32>
    %124 = arith.select %121, %119, %123 : vector<8x128xi1>, vector<8x128xf32>
    %c20 = arith.constant 20 : index
    %125 = memref.load %arg1[%c20] : memref<33xf32, #tpu.memory_space<smem>>
    %126 = vector.broadcast %125 : f32 to vector<8x128xf32>
    %127 = arith.mulf %54, %126 : vector<8x128xf32>
    %c21 = arith.constant 21 : index
    %128 = memref.load %arg1[%c21] : memref<33xf32, #tpu.memory_space<smem>>
    %129 = vector.broadcast %128 : f32 to vector<8x128xf32>
    %130 = arith.mulf %109, %129 : vector<8x128xf32>
    %131 = arith.addf %127, %130 : vector<8x128xf32>
    %c23 = arith.constant 23 : index
    %132 = memref.load %arg1[%c23] : memref<33xf32, #tpu.memory_space<smem>>
    %133 = vector.broadcast %132 : f32 to vector<8x128xf32>
    %134 = arith.addf %131, %133 : vector<8x128xf32>
    %cst_53 = arith.constant 0.000000e+00 : f32
    %135 = vector.broadcast %cst_53 : f32 to vector<8x128xf32>
    %136 = arith.cmpf ogt, %134, %135 : vector<8x128xf32>
    %cst_54 = arith.constant 0.00999999977 : f32
    %137 = vector.broadcast %cst_54 : f32 to vector<8x128xf32>
    %138 = arith.mulf %137, %134 : vector<8x128xf32>
    %139 = arith.select %136, %134, %138 : vector<8x128xi1>, vector<8x128xf32>
    %c24 = arith.constant 24 : index
    %140 = memref.load %arg1[%c24] : memref<33xf32, #tpu.memory_space<smem>>
    %141 = vector.broadcast %140 : f32 to vector<8x128xf32>
    %142 = arith.mulf %124, %141 : vector<8x128xf32>
    %c25 = arith.constant 25 : index
    %143 = memref.load %arg1[%c25] : memref<33xf32, #tpu.memory_space<smem>>
    %144 = vector.broadcast %143 : f32 to vector<8x128xf32>
    %145 = arith.mulf %139, %144 : vector<8x128xf32>
    %146 = arith.addf %142, %145 : vector<8x128xf32>
    %c28 = arith.constant 28 : index
    %147 = memref.load %arg1[%c28] : memref<33xf32, #tpu.memory_space<smem>>
    %148 = vector.broadcast %147 : f32 to vector<8x128xf32>
    %149 = arith.addf %146, %148 : vector<8x128xf32>
    %cst_55 = arith.constant 0.000000e+00 : f32
    %150 = vector.broadcast %cst_55 : f32 to vector<8x128xf32>
    %151 = arith.cmpf ogt, %149, %150 : vector<8x128xf32>
    %cst_56 = arith.constant 0.00999999977 : f32
    %152 = vector.broadcast %cst_56 : f32 to vector<8x128xf32>
    %153 = arith.mulf %152, %149 : vector<8x128xf32>
    %154 = arith.select %151, %149, %153 : vector<8x128xi1>, vector<8x128xf32>
    %c26 = arith.constant 26 : index
    %155 = memref.load %arg1[%c26] : memref<33xf32, #tpu.memory_space<smem>>
    %156 = vector.broadcast %155 : f32 to vector<8x128xf32>
    %157 = arith.mulf %124, %156 : vector<8x128xf32>
    %c27 = arith.constant 27 : index
    %158 = memref.load %arg1[%c27] : memref<33xf32, #tpu.memory_space<smem>>
    %159 = vector.broadcast %158 : f32 to vector<8x128xf32>
    %160 = arith.mulf %139, %159 : vector<8x128xf32>
    %161 = arith.addf %157, %160 : vector<8x128xf32>
    %c29 = arith.constant 29 : index
    %162 = memref.load %arg1[%c29] : memref<33xf32, #tpu.memory_space<smem>>
    %163 = vector.broadcast %162 : f32 to vector<8x128xf32>
    %164 = arith.addf %161, %163 : vector<8x128xf32>
    %cst_57 = arith.constant 0.000000e+00 : f32
    %165 = vector.broadcast %cst_57 : f32 to vector<8x128xf32>
    %166 = arith.cmpf ogt, %164, %165 : vector<8x128xf32>
    %cst_58 = arith.constant 0.00999999977 : f32
    %167 = vector.broadcast %cst_58 : f32 to vector<8x128xf32>
    %168 = arith.mulf %167, %164 : vector<8x128xf32>
    %169 = arith.select %166, %164, %168 : vector<8x128xi1>, vector<8x128xf32>
    %c30 = arith.constant 30 : index
    %170 = memref.load %arg1[%c30] : memref<33xf32, #tpu.memory_space<smem>>
    %171 = vector.broadcast %170 : f32 to vector<8x128xf32>
    %172 = arith.mulf %154, %171 : vector<8x128xf32>
    %c31 = arith.constant 31 : index
    %173 = memref.load %arg1[%c31] : memref<33xf32, #tpu.memory_space<smem>>
    %174 = vector.broadcast %173 : f32 to vector<8x128xf32>
    %175 = arith.mulf %169, %174 : vector<8x128xf32>
    %176 = arith.addf %172, %175 : vector<8x128xf32>
    %c32 = arith.constant 32 : index
    %177 = memref.load %arg1[%c32] : memref<33xf32, #tpu.memory_space<smem>>
    %178 = vector.broadcast %177 : f32 to vector<8x128xf32>
    %179 = arith.addf %176, %178 : vector<8x128xf32>
    %c0_59 = arith.constant 0 : index
    %c0_60 = arith.constant 0 : index
    %180 = vector.load %arg3[%c0_59, %c0_60] : memref<8x128xf32, #tpu.memory_space<vmem>>, vector<8x128xf32>
    tpu.vector_store %arg3[%c0_59, %c0_60], %179 {strides = array<i32>} : memref<8x128xf32, #tpu.memory_space<vmem>>, vector<8x128xf32>,
    return
  }
  func.func @transform_0(%arg0: i32) -> i32 {
    %c0_i32 = arith.constant 0 : i32
    %c0_i32_0 = arith.constant 0 : i32
    return %c0_i32 : i32
  }
  func.func @transform_1(%arg0: i32) -> (i32, i32, i32) {
    %c0_i32 = arith.constant 0 : i32
    %c0_i32_0 = arith.constant 0 : i32
    %c0_i32_1 = arith.constant 0 : i32
    return %c0_i32, %c0_i32_0, %arg0 : i32, i32, i32
  }
  func.func @transform_2(%arg0: i32) -> (i32, i32) {
    %c0_i32 = arith.constant 0 : i32
    %c0_i32_0 = arith.constant 0 : i32
    return %c0_i32, %arg0 : i32, i32
  }
}

</mosaic_0001>

<llo_original>
// kernel: tpu_custom_call.1
$region0: #{tpu_custom_call.1}
  #allocation0 [shape = 'u32[]', space=smem, size = 0x4, offset = 0x4, fixed_abs, tag = 'smem constant byte address 0x4 - core index']
  #allocation1 [shape = 'u32[144,128]{1,0:T(1,128)}', space=vmem, size = 0x12000, scoped, tag = 'internal scratch']
  %s0 = inlined_call_operand.hbm [shape: f32[33], index: 0, kind: input, shape index: {}]
  %s1 = inlined_call_operand.hbm [shape: f32[8,8,128], index: 1, kind: input, shape index: {}]
  %s2 = inlined_call_operand.hbm [shape: f32[8,128], index: 2, kind: output, shape index: {}]
  %s3 = sld [smem:[#allocation0]]
  $region26: #{tpu_custom_call.1} parent=0
    _
  %s5 = ssub.s32 1, %s3
  %s6 = scalar_select 0, %s5, %s3
  $region1: #{tpu_custom_call.1} parent=0
    #allocation2 [shape = 'u8[512]{0}', space=smem, size = 0x200, scoped, tag = 'input window, operand 0, single buffered']
    #allocation3 [shape = 's32[1]{0}', space=sflag, size = 0x4, scoped, tag = 'scoped memory for tpu_custom_call.1']
    #allocation4 [shape = 's32[1]{0}', space=sflag, size = 0x4, scoped, tag = 'scoped memory for tpu_custom_call.1']
    #allocation5 [shape = 's32[1]{0}', space=sflag, size = 0x4, scoped, tag = 'scoped memory for tpu_custom_call.1']
    #allocation6 [shape = 'u8[32768]{0}', space=vmem, size = 0x8000, scoped, tag = 'input window, operand 1, single buffered']
    #allocation7 [shape = 'u8[4096]{0}', space=vmem, size = 0x1000, scoped, tag = 'output window, operand 0, single buffered']
    %7 = vsyncpa [#allocation5], 0
    %8 = vsyncpa [#allocation3], 0
    %9 = vsyncpa [#allocation4], 0
    // Predicated region
    $region2: #{tpu_custom_call.1} parent=1 // pred_check
      _
    $region3: #{tpu_custom_call.1} parent=1 // pred_check_branch
      %11 = sbr.rel (0) target = $region5
    $region4: #{tpu_custom_call.1} parent=1 // pred_region
      %s13 = ssub.s32 16, 16
      %14 = vsyncadd [#allocation5], %s13
      %17 = dma.hbm_to_smem %s0, 16, [#allocation2], [#allocation5]
    $region5: #{tpu_custom_call.1} parent=1 // pred_fallthru
      _
    // Predicated region
    $region6: #{tpu_custom_call.1} parent=1 // pred_check
      _
    $region7: #{tpu_custom_call.1} parent=1 // pred_check_branch
      %19 = sbr.rel (0) target = $region9
    $region8: #{tpu_custom_call.1} parent=1 // pred_region
      %s21 = ssub.s32 1024, 1024
      %22 = vsyncadd [#allocation3], %s21
      %s23 = sshll.u32 [#allocation6], 4
      %s24 = int_to_ptr.vmem [resolvable:$true] %s23
      %29 = dma.hbm_to_vmem [thread:$0]  %s1, 1024, %s24, [#allocation3], 128, 128, 8
    $region9: #{tpu_custom_call.1} parent=1 // pred_fallthru
      _
    // Predicated region
    $region10: #{tpu_custom_call.1} parent=1 // pred_check
      _
    $region11: #{tpu_custom_call.1} parent=1 // pred_check_branch
      %31 = sbr.rel (0) target = $region13
    $region12: #{tpu_custom_call.1} parent=1 // pred_region
      %32 = dma.done [#allocation5], 16
    $region13: #{tpu_custom_call.1} parent=1 // pred_fallthru
      _
    // Predicated region
    $region14: #{tpu_custom_call.1} parent=1 // pred_check
      _
    $region15: #{tpu_custom_call.1} parent=1 // pred_check_branch
      %34 = sbr.rel (0) target = $region17
    $region16: #{tpu_custom_call.1} parent=1 // pred_region
      %35 = dma.done [#allocation3], 1024
    $region17: #{tpu_custom_call.1} parent=1 // pred_fallthru
      _
    %36 = sfence
    %v37 = vld [vmem:[#allocation6] sm:$0xff]
    %s38 = sld [smem:[#allocation2]]
    %v39 = vstv %s38
    %v40 = vmul.f32 %v37, %v39
    %s41 = scalar_lea.vmem [#allocation6], 8
    %v42 = vld [vmem:[%s41] sm:$0xff]
    %s43 = sld [smem:[#allocation2 + $0x1]]
    %v44 = vstv %s43
    %v45 = vmul.f32 %v42, %v44
    %v46 = vadd.f32 %v40, %v45
    %s47 = scalar_lea.vmem [#allocation6], 16
    %v48 = vld [vmem:[%s47] sm:$0xff]
    %s49 = sld [smem:[#allocation2 + $0x2]]
    %v50 = vstv %s49
    %v51 = vmul.f32 %v48, %v50
    %v52 = vadd.f32 %v46, %v51
    %s53 = scalar_lea.vmem [#allocation6], 24
    %v54 = vld [vmem:[%s53] sm:$0xff]
    %s55 = sld [smem:[#allocation2 + $0x3]]
    %v56 = vstv %s55
    %v57 = vmul.f32 %v54, %v56
    %v58 = vadd.f32 %v52, %v57
    %s59 = scalar_lea.vmem [#allocation6], 32
    %v60 = vld [vmem:[%s59] sm:$0xff]
    %s61 = sld [smem:[#allocation2 + $0x4]]
    %v62 = vstv %s61
    %v63 = vmul.f32 %v60, %v62
    %v64 = vadd.f32 %v58, %v63
    %s65 = scalar_lea.vmem [#allocation6], 40
    %v66 = vld [vmem:[%s65] sm:$0xff]
    %s67 = sld [smem:[#allocation2 + $0x5]]
    %v68 = vstv %s67
    %v69 = vmul.f32 %v66, %v68
    %v70 = vadd.f32 %v64, %v69
    %s71 = scalar_lea.vmem [#allocation6], 48
    %v72 = vld [vmem:[%s71] sm:$0xff]
    %s73 = sld [smem:[#allocation2 + $0x6]]
    %v74 = vstv %s73
    %v75 = vmul.f32 %v72, %v74
    %v76 = vadd.f32 %v70, %v75
    %s77 = scalar_lea.vmem [#allocation6], 56
    %v78 = vld [vmem:[%s77] sm:$0xff]
    %s79 = sld [smem:[#allocation2 + $0x7]]
    %v80 = vstv %s79
    %v81 = vmul.f32 %v78, %v80
    %v82 = vadd.f32 %v76, %v81
    %s83 = sld [smem:[#allocation2 + $0x10]]
    %v84 = vstv %s83
    %v85 = vadd.f32 %v82, %v84
    %vm86 = vcmp.gt.f32.partialorder %v85, 0.0
    %v87 = vmul.f32 %v85, 0.01
    %v88 = vsel %vm86, %v85, %v87
    %s89 = sld [smem:[#allocation2 + $0x8]]
    %v90 = vstv %s89
    %v91 = vmul.f32 %v37, %v90
    %s92 = sld [smem:[#allocation2 + $0x9]]
    %v93 = vstv %s92
    %v94 = vmul.f32 %v42, %v93
    %v95 = vadd.f32 %v91, %v94
    %s96 = sld [smem:[#allocation2 + $0xa]]
    %v97 = vstv %s96
    %v98 = vmul.f32 %v48, %v97
    %v99 = vadd.f32 %v95, %v98
    %s100 = sld [smem:[#allocation2 + $0xb]]
    %v101 = vstv %s100
    %v102 = vmul.f32 %v54, %v101
    %v103 = vadd.f32 %v99, %v102
    %s104 = sld [smem:[#allocation2 + $0xc]]
    %v105 = vstv %s104
    %v106 = vmul.f32 %v60, %v105
    %v107 = vadd.f32 %v103, %v106
    %s108 = sld [smem:[#allocation2 + $0xd]]
    %v109 = vstv %s108
    %v110 = vmul.f32 %v66, %v109
    %v111 = vadd.f32 %v107, %v110
    %s112 = sld [smem:[#allocation2 + $0xe]]
    %v113 = vstv %s112
    %v114 = vmul.f32 %v72, %v113
    %v115 = vadd.f32 %v111, %v114
    %s116 = sld [smem:[#allocation2 + $0xf]]
    %v117 = vstv %s116
    %v118 = vmul.f32 %v78, %v117
    %v119 = vadd.f32 %v115, %v118
    %s120 = sld [smem:[#allocation2 + $0x11]]
    %v121 = vstv %s120
    %v122 = vadd.f32 %v119, %v121
    %vm123 = vcmp.gt.f32.partialorder %v122, 0.0
    %v124 = vmul.f32 %v122, 0.01
    %v125 = vsel %vm123, %v122, %v124
    %s126 = sld [smem:[#allocation2 + $0x12]]
    %v127 = vstv %s126
    %v128 = vmul.f32 %v88, %v127
    %s129 = sld [smem:[#allocation2 + $0x13]]
    %v130 = vstv %s129
    %v131 = vmul.f32 %v125, %v130
    %v132 = vadd.f32 %v128, %v131
    %s133 = sld [smem:[#allocation2 + $0x16]]
    %v134 = vstv %s133
    %v135 = vadd.f32 %v132, %v134
    %vm136 = vcmp.gt.f32.partialorder %v135, 0.0
    %v137 = vmul.f32 %v135, 0.01
    %v138 = vsel %vm136, %v135, %v137
    %s139 = sld [smem:[#allocation2 + $0x14]]
    %v140 = vstv %s139
    %v141 = vmul.f32 %v88, %v140
    %s142 = sld [smem:[#allocation2 + $0x15]]
    %v143 = vstv %s142
    %v144 = vmul.f32 %v125, %v143
    %v145 = vadd.f32 %v141, %v144
    %s146 = sld [smem:[#allocation2 + $0x17]]
    %v147 = vstv %s146
    %v148 = vadd.f32 %v145, %v147
    %vm149 = vcmp.gt.f32.partialorder %v148, 0.0
    %v150 = vmul.f32 %v148, 0.01
    %v151 = vsel %vm149, %v148, %v150
    %s152 = sld [smem:[#allocation2 + $0x18]]
    %v153 = vstv %s152
    %v154 = vmul.f32 %v138, %v153
    %s155 = sld [smem:[#allocation2 + $0x19]]
    %v156 = vstv %s155
    %v157 = vmul.f32 %v151, %v156
    %v158 = vadd.f32 %v154, %v157
    %s159 = sld [smem:[#allocation2 + $0x1c]]
    %v160 = vstv %s159
    %v161 = vadd.f32 %v158, %v160
    %vm162 = vcmp.gt.f32.partialorder %v161, 0.0
    %v163 = vmul.f32 %v161, 0.01
    %v164 = vsel %vm162, %v161, %v163
    %s165 = sld [smem:[#allocation2 + $0x1a]]
    %v166 = vstv %s165
    %v167 = vmul.f32 %v138, %v166
    %s168 = sld [smem:[#allocation2 + $0x1b]]
    %v169 = vstv %s168
    %v170 = vmul.f32 %v151, %v169
    %v171 = vadd.f32 %v167, %v170
    %s172 = sld [smem:[#allocation2 + $0x1d]]
    %v173 = vstv %s172
    %v174 = vadd.f32 %v171, %v173
    %vm175 = vcmp.gt.f32.partialorder %v174, 0.0
    %v176 = vmul.f32 %v174, 0.01
    %v177 = vsel %vm175, %v174, %v176
    %s178 = sld [smem:[#allocation2 + $0x1e]]
    %v179 = vstv %s178
    %v180 = vmul.f32 %v164, %v179
    %s181 = sld [smem:[#allocation2 + $0x1f]]
    %v182 = vstv %s181
    %v183 = vmul.f32 %v177, %v182
    %v184 = vadd.f32 %v180, %v183
    %s185 = sld [smem:[#allocation2 + $0x20]]
    %v186 = vstv %s185
    %v187 = vadd.f32 %v184, %v186
    %188 = vst [vmem:[#allocation7] sm:$0xff] %v187
    // Predicated region
    $region18: #{tpu_custom_call.1} parent=1 // pred_check
      _
    $region19: #{tpu_custom_call.1} parent=1 // pred_check_branch
      %190 = sbr.rel (0) target = $region21
    $region20: #{tpu_custom_call.1} parent=1 // pred_region
      %s192 = ssub.s32 128, 128
      %193 = vsyncadd [#allocation4], %s192
      %s195 = sshll.u32 [#allocation7], 4
      %s196 = int_to_ptr.vmem [resolvable:$true] %s195
      %198 = dma.vmem_to_hbm [thread:$0]  %s196, 128, %s2, [#allocation4]
    $region21: #{tpu_custom_call.1} parent=1 // pred_fallthru
      _
    // Predicated region
    $region22: #{tpu_custom_call.1} parent=1 // pred_check
      _
    $region23: #{tpu_custom_call.1} parent=1 // pred_check_branch
      %200 = sbr.rel (0) target = $region25
    $region24: #{tpu_custom_call.1} parent=1 // pred_region
      %201 = dma.done [#allocation4], 128
    $region25: #{tpu_custom_call.1} parent=1 // pred_fallthru
      _
    %202 = vsyncpa [#allocation3], 1
    %203 = vsyncpa [#allocation4], 1
    %204 = vsyncpa [#allocation5], 1

</llo_original>
